<compile_context>
chip_gen: v5e
topology: v5e:2x2
jax: 0.10.0
libtpu: 0.0.40
codegen_flags: <defaults>
</compile_context>

<pallas_src>
import functools

import jax
import jax.numpy as jnp
import numpy as np
from jax import lax
from jax.experimental import pallas as pl


# ---------------------------------------------------------------------------
# Pallas kernel: one full bidirectional LSTM layer + Linear embedding
# ---------------------------------------------------------------------------
def bilstm_kernel(
    xcat_ref,    # (T*Bp, 2*nIn)  f32  [x_t | x_{T-1-t}] per row
    wih_ref,     # (2*nIn, 8H)    f32  block-diag, gate-interleaved input weight
    whh_ref,     # (2H,    8H)    f32  block-diag, gate-interleaved recurrent weight
    b_ref,       # (1,     8H)    f32  fused (b_ih + b_hh) for both directions
    wemb_ref,    # (2H,  nOutP)   f32  embedding weight, lane-padded
    bemb_ref,    # (1,   nOutP)   f32
    out_ref,     # (T*Bp, nOutP)  f32
    *, T, Bp, H,
):
    H2 = 2 * H

    # ---- fused, hoisted input projection (one lane-dense matmul, off chain) --
    gx = (
        jnp.dot(xcat_ref[...], wih_ref[...], preferred_element_type=jnp.float32)
        + b_ref[...]
    )                                                  # (T*Bp, 8H), held in vregs

    whh = whh_ref[...]                                 # (2H, 8H)

    h = jnp.zeros((Bp, H2), jnp.float32)               # [h_fwd | h_rev]
    c = jnp.zeros((Bp, H2), jnp.float32)               # [c_fwd | c_rev]
    h_steps = []

    # ---- fused, fully-unrolled recurrence (fwd time t / rev time T-1-t) -----
    for t in range(T):
        gates = gx[t * Bp:(t + 1) * Bp, :]             # aligned (Bp, 8H) row block
        if t > 0:   # h0 == 0 -> the h @ W_hh term vanishes on the first step
            gates = gates + jnp.dot(h, whh, preferred_element_type=jnp.float32)

        # one sigmoid + one tanh pass over the whole gate slab (2 EUP pushes)
        sig = jax.nn.sigmoid(gates)
        tnh = jnp.tanh(gates)
        i = sig[:, 0 * H2:1 * H2]
        f = sig[:, 1 * H2:2 * H2]
        g = tnh[:, 2 * H2:3 * H2]
        o = sig[:, 3 * H2:4 * H2]

        c = f * c + i * g
        h = o * jnp.tanh(c)
        h_steps.append(h)                              # [hf(t) | hr(T-1-t)]

    # ---- re-pair hf(t) with hr(t) (lane select), one embedding matmul -------
    lane = lax.broadcasted_iota(jnp.int32, (Bp, H2), 1)
    is_fwd = lane < H
    rows = [jnp.where(is_fwd, h_steps[t], h_steps[T - 1 - t]) for t in range(T)]
    h_all = jnp.concatenate(rows, axis=0)              # (T*Bp, 2H), time ordered

    out_ref[...] = (
        jnp.dot(h_all, wemb_ref[...], preferred_element_type=jnp.float32)
        + bemb_ref[...]
    )


# ---------------------------------------------------------------------------
# Wrapper (glue: gate interleave, block-diag fusion, padding, pallas_call)
# ---------------------------------------------------------------------------
def _fuse_gate_cols(mat_f, mat_r, H):
    # (rows, 4H) with PyTorch gate blocks [i f g o] for each direction
    #   -> (rows, 8H) interleaved layout [i_f i_r | f_f f_r | g_f g_r | o_f o_r]
    blocks = []
    for k in range(4):
        blocks.append(mat_f[:, k * H:(k + 1) * H])
        blocks.append(mat_r[:, k * H:(k + 1) * H])
    return jnp.concatenate(blocks, axis=1)


def bidirectional_lstm(x, params):
    """x: (T, B, nIn) -> (T, B, nOut). Matches BidirectionalLSTM.forward."""
    T, B, nIn = x.shape
    H = params["w_hh_f"].shape[1]
    nOut = params["w_emb"].shape[0]
    nOutP = max(128, ((nOut + 127) // 128) * 128)      # lane-dense output width
    Bp = ((B + 7) // 8) * 8                            # sublane-aligned batch
    pad = nOutP - nOut

    # ---- fused weights -------------------------------------------------------
    wih_f_t, wih_r_t = params["w_ih_f"].T, params["w_ih_r"].T      # (nIn, 4H)
    whh_f_t, whh_r_t = params["w_hh_f"].T, params["w_hh_r"].T      # (H,   4H)
    zi = jnp.zeros_like(wih_f_t)
    zh = jnp.zeros_like(whh_f_t)
    wih_bd = jnp.concatenate(
        [_fuse_gate_cols(wih_f_t, zi, H), _fuse_gate_cols(zi, wih_r_t, H)], axis=0
    )                                                              # (2*nIn, 8H)
    whh_bd = jnp.concatenate(
        [_fuse_gate_cols(whh_f_t, zh, H), _fuse_gate_cols(zh, whh_r_t, H)], axis=0
    )                                                              # (2H, 8H)
    bf = (params["b_ih_f"] + params["b_hh_f"]).reshape(1, 4 * H)
    br = (params["b_ih_r"] + params["b_hh_r"]).reshape(1, 4 * H)
    b_cat = _fuse_gate_cols(bf, br, H)                             # (1, 8H)

    wemb_cat = jnp.pad(params["w_emb"].T, ((0, 0), (0, pad)))      # (2H, nOutP)
    bemb = jnp.pad(params["b_emb"], (0, pad)).reshape(1, nOutP)

    # ---- input: pad batch to a sublane tile, pair x_t with x_{T-1-t} --------
    x_p = jnp.pad(x, ((0, 0), (0, Bp - B), (0, 0)))
    xcat = jnp.concatenate(
        [x_p.reshape(T * Bp, nIn), x_p[::-1].reshape(T * Bp, nIn)], axis=1
    )                                                              # (T*Bp, 2*nIn)

    out2 = pl.pallas_call(
        functools.partial(bilstm_kernel, T=T, Bp=Bp, H=H),
        out_shape=jax.ShapeDtypeStruct((T * Bp, nOutP), jnp.float32),
    )(xcat, wih_bd, whh_bd, b_cat, wemb_cat, bemb)

    return out2.reshape(T, Bp, nOutP)[:, :B, :nOut]


# ---------------------------------------------------------------------------
# Pure-JAX reference (correctness check)
# ---------------------------------------------------------------------------
def _lstm_dir_ref(x, w_ih, w_hh, b_ih, b_hh, reverse=False):
    T, B, _ = x.shape
    H = w_hh.shape[1]

    def step(carry, x_t):
        h, c = carry
        gates = x_t @ w_ih.T + b_ih + h @ w_hh.T + b_hh
        i, f, g, o = jnp.split(gates, 4, axis=-1)
        i = jax.nn.sigmoid(i)
        f = jax.nn.sigmoid(f)
        g = jnp.tanh(g)
        o = jax.nn.sigmoid(o)
        c = f * c + i * g
        h = o * jnp.tanh(c)
        return (h, c), h

    h0 = jnp.zeros((B, H), jnp.float32)
    c0 = jnp.zeros((B, H), jnp.float32)
    xs = x[::-1] if reverse else x
    _, hs = lax.scan(step, (h0, c0), xs)
    return hs[::-1] if reverse else hs


def bidirectional_lstm_ref(x, params):
    hf = _lstm_dir_ref(x, params["w_ih_f"], params["w_hh_f"],
                       params["b_ih_f"], params["b_hh_f"], reverse=False)
    hr = _lstm_dir_ref(x, params["w_ih_r"], params["w_hh_r"],
                       params["b_ih_r"], params["b_hh_r"], reverse=True)
    rec = jnp.concatenate([hf, hr], axis=-1)           # (T, B, 2H)
    T, B, h2 = rec.shape
    out = rec.reshape(T * B, h2) @ params["w_emb"].T + params["b_emb"]
    return out.reshape(T, B, -1)


# ---------------------------------------------------------------------------
# Main
# ---------------------------------------------------------------------------
if __name__ == "__main__":
    T, B = 8, 2
    nHidden = 32
    nClasses = 10
    nIn0 = 2 * nHidden          # CRNN feeds the rnn head with nHidden*2 features

    key = jax.random.PRNGKey(0)
    ks = jax.random.split(key, 32)

    def make_params(keys, nIn, H, nOut):
        k_std = 1.0 / np.sqrt(H)

        def u(k, shape):
            return jax.random.uniform(k, shape, jnp.float32, -k_std, k_std)

        return {
            "w_ih_f": u(keys[0], (4 * H, nIn)),
            "w_hh_f": u(keys[1], (4 * H, H)),
            "b_ih_f": u(keys[2], (4 * H,)),
            "b_hh_f": u(keys[3], (4 * H,)),
            "w_ih_r": u(keys[4], (4 * H, nIn)),
            "w_hh_r": u(keys[5], (4 * H, H)),
            "b_ih_r": u(keys[6], (4 * H,)),
            "b_hh_r": u(keys[7], (4 * H,)),
            "w_emb":  u(keys[8], (nOut, 2 * H)),
            "b_emb":  u(keys[9], (nOut,)),
        }

    # CRNN rnn head: BiLSTM(2*nHidden -> nHidden -> nHidden), then
    #                BiLSTM(nHidden -> nHidden -> nClasses)
    params1 = make_params(ks[0:10], nIn0, nHidden, nHidden)
    params2 = make_params(ks[10:20], nHidden, nHidden, nClasses)

    x = jax.random.normal(ks[20], (T, B, nIn0), jnp.float32)

    y1 = bidirectional_lstm(x, params1)
    y2 = bidirectional_lstm(y1, params2)
    out = jnp.transpose(y2, (1, 0, 2))                  # CRNN: output.transpose(1, 0)
    out = jax.block_until_ready(out)

    r1 = bidirectional_lstm_ref(x, params1)
    r2 = bidirectional_lstm_ref(r1, params2)
    ref = jax.block_until_ready(jnp.transpose(r2, (1, 0, 2)))

    np.testing.assert_allclose(np.asarray(out), np.asarray(ref),
                               rtol=1e-5, atol=1e-4)
    print("KERNEL_OK")
</pallas_src>

<mosaic_0001>
module attributes {stable_mosaic.version = 11 : i64} {
  func.func @bilstm_kernel(%arg0: memref<64x128xf32, #tpu.memory_space<vmem>>, %arg1: memref<128x256xf32, #tpu.memory_space<vmem>>, %arg2: memref<64x256xf32, #tpu.memory_space<vmem>>, %arg3: memref<1x256xf32, #tpu.memory_space<vmem>>, %arg4: memref<64x128xf32, #tpu.memory_space<vmem>>, %arg5: memref<1x128xf32, #tpu.memory_space<vmem>>, %arg6: memref<64x128xf32, #tpu.memory_space<vmem>>) attributes {dimension_semantics = [], scalar_prefetch = 0 : i64, scratch_operands = 0 : i64, tpu.core_type = #tpu.core_type<tc>} {
    %c0 = arith.constant 0 : index
    %c0_0 = arith.constant 0 : index
    %0 = vector.load %arg0[%c0, %c0_0] : memref<64x128xf32, #tpu.memory_space<vmem>>, vector<64x128xf32>
    %c0_1 = arith.constant 0 : index
    %c0_2 = arith.constant 0 : index
    %1 = vector.load %arg1[%c0_1, %c0_2] : memref<128x256xf32, #tpu.memory_space<vmem>>, vector<128x256xf32>
    %cst = arith.constant dense<0.000000e+00> : vector<64x256xf32>
    %2 = tpu.matmul %0, %1, %cst {dimension_numbers = #tpu.dot_dimension_numbers<[1], [0], [0], [1], [0, 0, 1, 1], [], []>} : vector<64x128xf32>, vector<128x256xf32>, vector<64x256xf32> -> vector<64x256xf32>
    %c0_3 = arith.constant 0 : index
    %c0_4 = arith.constant 0 : index
    %3 = vector.load %arg3[%c0_3, %c0_4] : memref<1x256xf32, #tpu.memory_space<vmem>>, vector<1x256xf32>
    %4 = vector.broadcast %3 : vector<1x256xf32> to vector<64x256xf32>
    %5 = arith.addf %2, %4 : vector<64x256xf32>
    %c0_5 = arith.constant 0 : index
    %c0_6 = arith.constant 0 : index
    %6 = vector.load %arg2[%c0_5, %c0_6] : memref<64x256xf32, #tpu.memory_space<vmem>>, vector<64x256xf32>
    %cst_7 = arith.constant 0.000000e+00 : f32
    %7 = vector.broadcast %cst_7 : f32 to vector<8x64xf32>
    %8 = vector.extract_strided_slice %5 {offsets = [0, 0], sizes = [8, 256], strides = [1, 1]} : vector<64x256xf32> to vector<8x256xf32>
    %9 = arith.negf %8 : vector<8x256xf32>
    %10 = math.exp %9 : vector<8x256xf32>
    %cst_8 = arith.constant 1.000000e+00 : f32
    %11 = vector.broadcast %cst_8 : f32 to vector<8x256xf32>
    %12 = arith.addf %11, %10 : vector<8x256xf32>
    %13 = arith.divf %11, %12 : vector<8x256xf32>
    %14 = math.tanh %8 : vector<8x256xf32>
    %15 = vector.extract_strided_slice %13 {offsets = [0, 0], sizes = [8, 64], strides = [1, 1]} : vector<8x256xf32> to vector<8x64xf32>
    %16 = vector.extract_strided_slice %13 {offsets = [0, 64], sizes = [8, 64], strides = [1, 1]} : vector<8x256xf32> to vector<8x64xf32>
    %17 = vector.extract_strided_slice %14 {offsets = [0, 128], sizes = [8, 64], strides = [1, 1]} : vector<8x256xf32> to vector<8x64xf32>
    %18 = vector.extract_strided_slice %13 {offsets = [0, 192], sizes = [8, 64], strides = [1, 1]} : vector<8x256xf32> to vector<8x64xf32>
    %19 = arith.mulf %16, %7 : vector<8x64xf32>
    %20 = arith.mulf %15, %17 : vector<8x64xf32>
    %21 = arith.addf %19, %20 : vector<8x64xf32>
    %22 = math.tanh %21 : vector<8x64xf32>
    %23 = arith.mulf %18, %22 : vector<8x64xf32>
    %24 = vector.extract_strided_slice %5 {offsets = [8, 0], sizes = [8, 256], strides = [1, 1]} : vector<64x256xf32> to vector<8x256xf32>
    %cst_9 = arith.constant dense<0.000000e+00> : vector<8x256xf32>
    %25 = tpu.matmul %23, %6, %cst_9 {dimension_numbers = #tpu.dot_dimension_numbers<[1], [0], [0], [1], [0, 0, 1, 1], [], []>} : vector<8x64xf32>, vector<64x256xf32>, vector<8x256xf32> -> vector<8x256xf32>
    %26 = arith.addf %24, %25 : vector<8x256xf32>
    %27 = arith.negf %26 : vector<8x256xf32>
    %28 = math.exp %27 : vector<8x256xf32>
    %cst_10 = arith.constant 1.000000e+00 : f32
    %29 = vector.broadcast %cst_10 : f32 to vector<8x256xf32>
    %30 = arith.addf %29, %28 : vector<8x256xf32>
    %31 = arith.divf %29, %30 : vector<8x256xf32>
    %32 = math.tanh %26 : vector<8x256xf32>
    %33 = vector.extract_strided_slice %31 {offsets = [0, 0], sizes = [8, 64], strides = [1, 1]} : vector<8x256xf32> to vector<8x64xf32>
    %34 = vector.extract_strided_slice %31 {offsets = [0, 64], sizes = [8, 64], strides = [1, 1]} : vector<8x256xf32> to vector<8x64xf32>
    %35 = vector.extract_strided_slice %32 {offsets = [0, 128], sizes = [8, 64], strides = [1, 1]} : vector<8x256xf32> to vector<8x64xf32>
    %36 = vector.extract_strided_slice %31 {offsets = [0, 192], sizes = [8, 64], strides = [1, 1]} : vector<8x256xf32> to vector<8x64xf32>
    %37 = arith.mulf %34, %21 : vector<8x64xf32>
    %38 = arith.mulf %33, %35 : vector<8x64xf32>
    %39 = arith.addf %37, %38 : vector<8x64xf32>
    %40 = math.tanh %39 : vector<8x64xf32>
    %41 = arith.mulf %36, %40 : vector<8x64xf32>
    %42 = vector.extract_strided_slice %5 {offsets = [16, 0], sizes = [8, 256], strides = [1, 1]} : vector<64x256xf32> to vector<8x256xf32>
    %cst_11 = arith.constant dense<0.000000e+00> : vector<8x256xf32>
    %43 = tpu.matmul %41, %6, %cst_11 {dimension_numbers = #tpu.dot_dimension_numbers<[1], [0], [0], [1], [0, 0, 1, 1], [], []>} : vector<8x64xf32>, vector<64x256xf32>, vector<8x256xf32> -> vector<8x256xf32>
    %44 = arith.addf %42, %43 : vector<8x256xf32>
    %45 = arith.negf %44 : vector<8x256xf32>
    %46 = math.exp %45 : vector<8x256xf32>
    %cst_12 = arith.constant 1.000000e+00 : f32
    %47 = vector.broadcast %cst_12 : f32 to vector<8x256xf32>
    %48 = arith.addf %47, %46 : vector<8x256xf32>
    %49 = arith.divf %47, %48 : vector<8x256xf32>
    %50 = math.tanh %44 : vector<8x256xf32>
    %51 = vector.extract_strided_slice %49 {offsets = [0, 0], sizes = [8, 64], strides = [1, 1]} : vector<8x256xf32> to vector<8x64xf32>
    %52 = vector.extract_strided_slice %49 {offsets = [0, 64], sizes = [8, 64], strides = [1, 1]} : vector<8x256xf32> to vector<8x64xf32>
    %53 = vector.extract_strided_slice %50 {offsets = [0, 128], sizes = [8, 64], strides = [1, 1]} : vector<8x256xf32> to vector<8x64xf32>
    %54 = vector.extract_strided_slice %49 {offsets = [0, 192], sizes = [8, 64], strides = [1, 1]} : vector<8x256xf32> to vector<8x64xf32>
    %55 = arith.mulf %52, %39 : vector<8x64xf32>
    %56 = arith.mulf %51, %53 : vector<8x64xf32>
    %57 = arith.addf %55, %56 : vector<8x64xf32>
    %58 = math.tanh %57 : vector<8x64xf32>
    %59 = arith.mulf %54, %58 : vector<8x64xf32>
    %60 = vector.extract_strided_slice %5 {offsets = [24, 0], sizes = [8, 256], strides = [1, 1]} : vector<64x256xf32> to vector<8x256xf32>
    %cst_13 = arith.constant dense<0.000000e+00> : vector<8x256xf32>
    %61 = tpu.matmul %59, %6, %cst_13 {dimension_numbers = #tpu.dot_dimension_numbers<[1], [0], [0], [1], [0, 0, 1, 1], [], []>} : vector<8x64xf32>, vector<64x256xf32>, vector<8x256xf32> -> vector<8x256xf32>
    %62 = arith.addf %60, %61 : vector<8x256xf32>
    %63 = arith.negf %62 : vector<8x256xf32>
    %64 = math.exp %63 : vector<8x256xf32>
    %cst_14 = arith.constant 1.000000e+00 : f32
    %65 = vector.broadcast %cst_14 : f32 to vector<8x256xf32>
    %66 = arith.addf %65, %64 : vector<8x256xf32>
    %67 = arith.divf %65, %66 : vector<8x256xf32>
    %68 = math.tanh %62 : vector<8x256xf32>
    %69 = vector.extract_strided_slice %67 {offsets = [0, 0], sizes = [8, 64], strides = [1, 1]} : vector<8x256xf32> to vector<8x64xf32>
    %70 = vector.extract_strided_slice %67 {offsets = [0, 64], sizes = [8, 64], strides = [1, 1]} : vector<8x256xf32> to vector<8x64xf32>
    %71 = vector.extract_strided_slice %68 {offsets = [0, 128], sizes = [8, 64], strides = [1, 1]} : vector<8x256xf32> to vector<8x64xf32>
    %72 = vector.extract_strided_slice %67 {offsets = [0, 192], sizes = [8, 64], strides = [1, 1]} : vector<8x256xf32> to vector<8x64xf32>
    %73 = arith.mulf %70, %57 : vector<8x64xf32>
    %74 = arith.mulf %69, %71 : vector<8x64xf32>
    %75 = arith.addf %73, %74 : vector<8x64xf32>
    %76 = math.tanh %75 : vector<8x64xf32>
    %77 = arith.mulf %72, %76 : vector<8x64xf32>
    %78 = vector.extract_strided_slice %5 {offsets = [32, 0], sizes = [8, 256], strides = [1, 1]} : vector<64x256xf32> to vector<8x256xf32>
    %cst_15 = arith.constant dense<0.000000e+00> : vector<8x256xf32>
    %79 = tpu.matmul %77, %6, %cst_15 {dimension_numbers = #tpu.dot_dimension_numbers<[1], [0], [0], [1], [0, 0, 1, 1], [], []>} : vector<8x64xf32>, vector<64x256xf32>, vector<8x256xf32> -> vector<8x256xf32>
    %80 = arith.addf %78, %79 : vector<8x256xf32>
    %81 = arith.negf %80 : vector<8x256xf32>
    %82 = math.exp %81 : vector<8x256xf32>
    %cst_16 = arith.constant 1.000000e+00 : f32
    %83 = vector.broadcast %cst_16 : f32 to vector<8x256xf32>
    %84 = arith.addf %83, %82 : vector<8x256xf32>
    %85 = arith.divf %83, %84 : vector<8x256xf32>
    %86 = math.tanh %80 : vector<8x256xf32>
    %87 = vector.extract_strided_slice %85 {offsets = [0, 0], sizes = [8, 64], strides = [1, 1]} : vector<8x256xf32> to vector<8x64xf32>
    %88 = vector.extract_strided_slice %85 {offsets = [0, 64], sizes = [8, 64], strides = [1, 1]} : vector<8x256xf32> to vector<8x64xf32>
    %89 = vector.extract_strided_slice %86 {offsets = [0, 128], sizes = [8, 64], strides = [1, 1]} : vector<8x256xf32> to vector<8x64xf32>
    %90 = vector.extract_strided_slice %85 {offsets = [0, 192], sizes = [8, 64], strides = [1, 1]} : vector<8x256xf32> to vector<8x64xf32>
    %91 = arith.mulf %88, %75 : vector<8x64xf32>
    %92 = arith.mulf %87, %89 : vector<8x64xf32>
    %93 = arith.addf %91, %92 : vector<8x64xf32>
    %94 = math.tanh %93 : vector<8x64xf32>
    %95 = arith.mulf %90, %94 : vector<8x64xf32>
    %96 = vector.extract_strided_slice %5 {offsets = [40, 0], sizes = [8, 256], strides = [1, 1]} : vector<64x256xf32> to vector<8x256xf32>
    %cst_17 = arith.constant dense<0.000000e+00> : vector<8x256xf32>
    %97 = tpu.matmul %95, %6, %cst_17 {dimension_numbers = #tpu.dot_dimension_numbers<[1], [0], [0], [1], [0, 0, 1, 1], [], []>} : vector<8x64xf32>, vector<64x256xf32>, vector<8x256xf32> -> vector<8x256xf32>
    %98 = arith.addf %96, %97 : vector<8x256xf32>
    %99 = arith.negf %98 : vector<8x256xf32>
    %100 = math.exp %99 : vector<8x256xf32>
    %cst_18 = arith.constant 1.000000e+00 : f32
    %101 = vector.broadcast %cst_18 : f32 to vector<8x256xf32>
    %102 = arith.addf %101, %100 : vector<8x256xf32>
    %103 = arith.divf %101, %102 : vector<8x256xf32>
    %104 = math.tanh %98 : vector<8x256xf32>
    %105 = vector.extract_strided_slice %103 {offsets = [0, 0], sizes = [8, 64], strides = [1, 1]} : vector<8x256xf32> to vector<8x64xf32>
    %106 = vector.extract_strided_slice %103 {offsets = [0, 64], sizes = [8, 64], strides = [1, 1]} : vector<8x256xf32> to vector<8x64xf32>
    %107 = vector.extract_strided_slice %104 {offsets = [0, 128], sizes = [8, 64], strides = [1, 1]} : vector<8x256xf32> to vector<8x64xf32>
    %108 = vector.extract_strided_slice %103 {offsets = [0, 192], sizes = [8, 64], strides = [1, 1]} : vector<8x256xf32> to vector<8x64xf32>
    %109 = arith.mulf %106, %93 : vector<8x64xf32>
    %110 = arith.mulf %105, %107 : vector<8x64xf32>
    %111 = arith.addf %109, %110 : vector<8x64xf32>
    %112 = math.tanh %111 : vector<8x64xf32>
    %113 = arith.mulf %108, %112 : vector<8x64xf32>
    %114 = vector.extract_strided_slice %5 {offsets = [48, 0], sizes = [8, 256], strides = [1, 1]} : vector<64x256xf32> to vector<8x256xf32>
    %cst_19 = arith.constant dense<0.000000e+00> : vector<8x256xf32>
    %115 = tpu.matmul %113, %6, %cst_19 {dimension_numbers = #tpu.dot_dimension_numbers<[1], [0], [0], [1], [0, 0, 1, 1], [], []>} : vector<8x64xf32>, vector<64x256xf32>, vector<8x256xf32> -> vector<8x256xf32>
    %116 = arith.addf %114, %115 : vector<8x256xf32>
    %117 = arith.negf %116 : vector<8x256xf32>
    %118 = math.exp %117 : vector<8x256xf32>
    %cst_20 = arith.constant 1.000000e+00 : f32
    %119 = vector.broadcast %cst_20 : f32 to vector<8x256xf32>
    %120 = arith.addf %119, %118 : vector<8x256xf32>
    %121 = arith.divf %119, %120 : vector<8x256xf32>
    %122 = math.tanh %116 : vector<8x256xf32>
    %123 = vector.extract_strided_slice %121 {offsets = [0, 0], sizes = [8, 64], strides = [1, 1]} : vector<8x256xf32> to vector<8x64xf32>
    %124 = vector.extract_strided_slice %121 {offsets = [0, 64], sizes = [8, 64], strides = [1, 1]} : vector<8x256xf32> to vector<8x64xf32>
    %125 = vector.extract_strided_slice %122 {offsets = [0, 128], sizes = [8, 64], strides = [1, 1]} : vector<8x256xf32> to vector<8x64xf32>
    %126 = vector.extract_strided_slice %121 {offsets = [0, 192], sizes = [8, 64], strides = [1, 1]} : vector<8x256xf32> to vector<8x64xf32>
    %127 = arith.mulf %124, %111 : vector<8x64xf32>
    %128 = arith.mulf %123, %125 : vector<8x64xf32>
    %129 = arith.addf %127, %128 : vector<8x64xf32>
    %130 = math.tanh %129 : vector<8x64xf32>
    %131 = arith.mulf %126, %130 : vector<8x64xf32>
    %132 = vector.extract_strided_slice %5 {offsets = [56, 0], sizes = [8, 256], strides = [1, 1]} : vector<64x256xf32> to vector<8x256xf32>
    %cst_21 = arith.constant dense<0.000000e+00> : vector<8x256xf32>
    %133 = tpu.matmul %131, %6, %cst_21 {dimension_numbers = #tpu.dot_dimension_numbers<[1], [0], [0], [1], [0, 0, 1, 1], [], []>} : vector<8x64xf32>, vector<64x256xf32>, vector<8x256xf32> -> vector<8x256xf32>
    %134 = arith.addf %132, %133 : vector<8x256xf32>
    %135 = arith.negf %134 : vector<8x256xf32>
    %136 = math.exp %135 : vector<8x256xf32>
    %cst_22 = arith.constant 1.000000e+00 : f32
    %137 = vector.broadcast %cst_22 : f32 to vector<8x256xf32>
    %138 = arith.addf %137, %136 : vector<8x256xf32>
    %139 = arith.divf %137, %138 : vector<8x256xf32>
    %140 = math.tanh %134 : vector<8x256xf32>
    %141 = vector.extract_strided_slice %139 {offsets = [0, 0], sizes = [8, 64], strides = [1, 1]} : vector<8x256xf32> to vector<8x64xf32>
    %142 = vector.extract_strided_slice %139 {offsets = [0, 64], sizes = [8, 64], strides = [1, 1]} : vector<8x256xf32> to vector<8x64xf32>
    %143 = vector.extract_strided_slice %140 {offsets = [0, 128], sizes = [8, 64], strides = [1, 1]} : vector<8x256xf32> to vector<8x64xf32>
    %144 = vector.extract_strided_slice %139 {offsets = [0, 192], sizes = [8, 64], strides = [1, 1]} : vector<8x256xf32> to vector<8x64xf32>
    %145 = arith.mulf %142, %129 : vector<8x64xf32>
    %146 = arith.mulf %141, %143 : vector<8x64xf32>
    %147 = arith.addf %145, %146 : vector<8x64xf32>
    %148 = math.tanh %147 : vector<8x64xf32>
    %149 = arith.mulf %144, %148 : vector<8x64xf32>
    %150 = tpu.iota {dimensions = array<i32: 1>} : vector<8x64xi32>
    %c32_i32 = arith.constant 32 : i32
    %151 = vector.broadcast %c32_i32 : i32 to vector<8x64xi32>
    %152 = arith.cmpi slt, %150, %151 : vector<8x64xi32>
    %153 = arith.select %152, %23, %149 : vector<8x64xi1>, vector<8x64xf32>
    %154 = arith.select %152, %41, %131 : vector<8x64xi1>, vector<8x64xf32>
    %155 = arith.select %152, %59, %113 : vector<8x64xi1>, vector<8x64xf32>
    %156 = arith.select %152, %77, %95 : vector<8x64xi1>, vector<8x64xf32>
    %157 = arith.select %152, %95, %77 : vector<8x64xi1>, vector<8x64xf32>
    %158 = arith.select %152, %113, %59 : vector<8x64xi1>, vector<8x64xf32>
    %159 = arith.select %152, %131, %41 : vector<8x64xi1>, vector<8x64xf32>
    %160 = arith.select %152, %149, %23 : vector<8x64xi1>, vector<8x64xf32>
    %161 = tpu.concatenate %153, %154, %155, %156, %157, %158, %159, %160 in 0 : vector<8x64xf32>, vector<8x64xf32>, vector<8x64xf32>, vector<8x64xf32>, vector<8x64xf32>, vector<8x64xf32>, vector<8x64xf32>, vector<8x64xf32> -> vector<64x64xf32>
    %c0_23 = arith.constant 0 : index
    %c0_24 = arith.constant 0 : index
    %162 = vector.load %arg4[%c0_23, %c0_24] : memref<64x128xf32, #tpu.memory_space<vmem>>, vector<64x128xf32>
    %cst_25 = arith.constant dense<0.000000e+00> : vector<64x128xf32>
    %163 = tpu.matmul %161, %162, %cst_25 {dimension_numbers = #tpu.dot_dimension_numbers<[1], [0], [0], [1], [0, 0, 1, 1], [], []>} : vector<64x64xf32>, vector<64x128xf32>, vector<64x128xf32> -> vector<64x128xf32>
    %c0_26 = arith.constant 0 : index
    %c0_27 = arith.constant 0 : index
    %164 = vector.load %arg5[%c0_26, %c0_27] : memref<1x128xf32, #tpu.memory_space<vmem>>, vector<1x128xf32>
    %165 = vector.broadcast %164 : vector<1x128xf32> to vector<64x128xf32>
    %166 = arith.addf %163, %165 : vector<64x128xf32>
    %c0_28 = arith.constant 0 : index
    %c0_29 = arith.constant 0 : index
    %167 = vector.load %arg6[%c0_28, %c0_29] : memref<64x128xf32, #tpu.memory_space<vmem>>, vector<64x128xf32>
    tpu.vector_store %arg6[%c0_28, %c0_29], %166 {strides = array<i32>} : memref<64x128xf32, #tpu.memory_space<vmem>>, vector<64x128xf32>,
    return
  }
}

</mosaic_0001>

<llo_original>
// kernel: tpu_custom_call.1
$region0: #{tpu_custom_call.1}
  #allocation0 [shape = 'u32[]', space=smem, size = 0x4, offset = 0x4, fixed_abs, tag = 'smem constant byte address 0x4 - core index']
  #allocation1 [shape = 'u32[72,128]{1,0:T(1,128)}', space=vmem, size = 0x9000, scoped, tag = 'internal scratch']
  %s0 = inlined_call_operand.hbm [shape: f32[64,128], index: 0, kind: input, shape index: {}]
  %s1 = inlined_call_operand.hbm [shape: f32[128,256], index: 1, kind: input, shape index: {}]
  %s2 = inlined_call_operand.hbm [shape: f32[64,256], index: 2, kind: input, shape index: {}]
  %s3 = inlined_call_operand.vmem [shape: f32[1,256], index: 3, kind: input, shape index: {}]
  %s4 = inlined_call_operand.hbm [shape: f32[64,128], index: 4, kind: input, shape index: {}]
  %s5 = inlined_call_operand.vmem [shape: f32[1,128], index: 5, kind: input, shape index: {}]
  %s6 = inlined_call_operand.hbm [shape: f32[64,128], index: 6, kind: output, shape index: {}]
  %s7 = sld [smem:[#allocation0]]
  $region50: #{tpu_custom_call.1} parent=0
    _
  %s9 = ssub.s32 1, %s7
  %s10 = scalar_select 0, %s9, %s7
  $region1: #{tpu_custom_call.1} parent=0
    #allocation2 [shape = 'u8[32768]{0}', space=vmem, size = 0x8000, scoped, tag = 'input window, operand 0, single buffered']
    #allocation3 [shape = 's32[1]{0}', space=sflag, size = 0x4, scoped, tag = 'scoped memory for tpu_custom_call.1']
    #allocation4 [shape = 's32[1]{0}', space=sflag, size = 0x4, scoped, tag = 'scoped memory for tpu_custom_call.1']
    #allocation5 [shape = 'u8[131072]{0}', space=vmem, size = 0x20000, scoped, tag = 'input window, operand 1, single buffered']
    #allocation6 [shape = 's32[1]{0}', space=sflag, size = 0x4, scoped, tag = 'scoped memory for tpu_custom_call.1']
    #allocation7 [shape = 'u8[65536]{0}', space=vmem, size = 0x10000, scoped, tag = 'input window, operand 2, single buffered']
    #allocation8 [shape = 'u8[32768]{0}', space=vmem, size = 0x8000, scoped, tag = 'input window, operand 4, single buffered']
    #allocation9 [shape = 's32[1]{0}', space=sflag, size = 0x4, scoped, tag = 'scoped memory for tpu_custom_call.1']
    #allocation10 [shape = 'u8[32768]{0}', space=vmem, size = 0x8000, scoped, tag = 'output window, operand 0, single buffered']
    %11 = vsyncpa [#allocation3], 0
    %12 = vsyncpa [#allocation6], 0
    %13 = vsyncpa [#allocation9], 0
    %14 = vsyncpa [#allocation4], 0
    // Predicated region
    $region2: #{tpu_custom_call.1} parent=1 // pred_check
      _
    $region3: #{tpu_custom_call.1} parent=1 // pred_check_branch
      %16 = sbr.rel (0) target = $region5
    $region4: #{tpu_custom_call.1} parent=1 // pred_region
      %18 = vsyncadd [#allocation3], 0
      %s19 = sshll.u32 %s0, 4
      %s20 = int_to_ptr.hbm [resolvable:$true] %s19
      %s21 = sshll.u32 [#allocation2], 4
      %s22 = int_to_ptr.vmem [resolvable:$true] %s21
      %27 = dma.hbm_to_vmem [thread:$0]  %s20, 1024, %s22, [#allocation3], 128, 128, 8
    $region5: #{tpu_custom_call.1} parent=1 // pred_fallthru
      _
    // Predicated region
    $region6: #{tpu_custom_call.1} parent=1 // pred_check
      _
    $region7: #{tpu_custom_call.1} parent=1 // pred_check_branch
      %29 = sbr.rel (0) target = $region9
    $region8: #{tpu_custom_call.1} parent=1 // pred_region
      %31 = vsyncadd [#allocation6], 0
      %s32 = sshll.u32 %s1, 4
      %s33 = int_to_ptr.hbm [resolvable:$true] %s32
      %s34 = sshll.u32 [#allocation5], 4
      %s35 = int_to_ptr.vmem [resolvable:$true] %s34
      %40 = dma.hbm_to_vmem [thread:$0]  %s33, 4096, %s35, [#allocation6], 256, 256, 16
    $region9: #{tpu_custom_call.1} parent=1 // pred_fallthru
      _
    // Predicated region
    $region10: #{tpu_custom_call.1} parent=1 // pred_check
      _
    $region11: #{tpu_custom_call.1} parent=1 // pred_check_branch
      %42 = sbr.rel (0) target = $region13
    $region12: #{tpu_custom_call.1} parent=1 // pred_region
      %44 = vsyncadd [#allocation6], 0
      %s45 = sshll.u32 %s2, 4
      %s46 = int_to_ptr.hbm [resolvable:$true] %s45
      %s47 = sshll.u32 [#allocation7], 4
      %s48 = int_to_ptr.vmem [resolvable:$true] %s47
      %53 = dma.hbm_to_vmem [thread:$0]  %s46, 2048, %s48, [#allocation6], 256, 256, 16
    $region13: #{tpu_custom_call.1} parent=1 // pred_fallthru
      _
    // Predicated region
    $region14: #{tpu_custom_call.1} parent=1 // pred_check
      _
    $region15: #{tpu_custom_call.1} parent=1 // pred_check_branch
      %55 = sbr.rel (0) target = $region17
    $region16: #{tpu_custom_call.1} parent=1 // pred_region
      _
    $region17: #{tpu_custom_call.1} parent=1 // pred_fallthru
      _
    // Predicated region
    $region18: #{tpu_custom_call.1} parent=1 // pred_check
      _
    $region19: #{tpu_custom_call.1} parent=1 // pred_check_branch
      %57 = sbr.rel (0) target = $region21
    $region20: #{tpu_custom_call.1} parent=1 // pred_region
      %59 = vsyncadd [#allocation9], 0
      %s60 = sshll.u32 %s4, 4
      %s61 = int_to_ptr.hbm [resolvable:$true] %s60
      %s62 = sshll.u32 [#allocation8], 4
      %s63 = int_to_ptr.vmem [resolvable:$true] %s62
      %68 = dma.hbm_to_vmem [thread:$0]  %s61, 1024, %s63, [#allocation9], 128, 128, 8
    $region21: #{tpu_custom_call.1} parent=1 // pred_fallthru
      _
    // Predicated region
    $region22: #{tpu_custom_call.1} parent=1 // pred_check
      _
    $region23: #{tpu_custom_call.1} parent=1 // pred_check_branch
      %70 = sbr.rel (0) target = $region25
    $region24: #{tpu_custom_call.1} parent=1 // pred_region
      _
    $region25: #{tpu_custom_call.1} parent=1 // pred_fallthru
      _
    // Predicated region
    $region26: #{tpu_custom_call.1} parent=1 // pred_check
      _
    $region27: #{tpu_custom_call.1} parent=1 // pred_check_branch
      %72 = sbr.rel (0) target = $region29
    $region28: #{tpu_custom_call.1} parent=1 // pred_region
      %74 = dma.done [#allocation3], 1024
    $region29: #{tpu_custom_call.1} parent=1 // pred_fallthru
      _
    // Predicated region
    $region30: #{tpu_custom_call.1} parent=1 // pred_check
      _
    $region31: #{tpu_custom_call.1} parent=1 // pred_check_branch
      %76 = sbr.rel (0) target = $region33
    $region32: #{tpu_custom_call.1} parent=1 // pred_region
      %78 = dma.done [#allocation6], 4096
    $region33: #{tpu_custom_call.1} parent=1 // pred_fallthru
      _
    // Predicated region
    $region34: #{tpu_custom_call.1} parent=1 // pred_check
      _
    $region35: #{tpu_custom_call.1} parent=1 // pred_check_branch
      %80 = sbr.rel (0) target = $region37
    $region36: #{tpu_custom_call.1} parent=1 // pred_region
      %82 = dma.done [#allocation6], 2048
    $region37: #{tpu_custom_call.1} parent=1 // pred_fallthru
      _
    // Predicated region
    $region38: #{tpu_custom_call.1} parent=1 // pred_check
      _
    $region39: #{tpu_custom_call.1} parent=1 // pred_check_branch
      %84 = sbr.rel (0) target = $region41
    $region40: #{tpu_custom_call.1} parent=1 // pred_region
      %86 = dma.done [#allocation9], 1024
    $region41: #{tpu_custom_call.1} parent=1 // pred_fallthru
      _
    %v87 = vld [vmem:[#allocation2] sm:$0xff]
    %v88 = vld [vmem:[#allocation2 + $0x8] sm:$0xff]
    %v89 = vld [vmem:[#allocation2 + $0x10] sm:$0xff]
    %v90 = vld [vmem:[#allocation2 + $0x18] sm:$0xff]
    %v91 = vld [vmem:[#allocation2 + $0x20] sm:$0xff]
    %v92 = vld [vmem:[#allocation2 + $0x28] sm:$0xff]
    %v93 = vld [vmem:[#allocation2 + $0x30] sm:$0xff]
    %v94 = vld [vmem:[#allocation2 + $0x38] sm:$0xff]
    %v95 = vld [vmem:[#allocation5] sm:$0xff]
    %v96 = vld [vmem:[#allocation5 + $0x8] sm:$0xff]
    %v97 = vld [vmem:[#allocation5 + $0x10] sm:$0xff]
    %v98 = vld [vmem:[#allocation5 + $0x18] sm:$0xff]
    %v99 = vld [vmem:[#allocation5 + $0x20] sm:$0xff]
    %v100 = vld [vmem:[#allocation5 + $0x28] sm:$0xff]
    %v101 = vld [vmem:[#allocation5 + $0x30] sm:$0xff]
    %v102 = vld [vmem:[#allocation5 + $0x38] sm:$0xff]
    %v103 = vld [vmem:[#allocation5 + $0x40] sm:$0xff]
    %v104 = vld [vmem:[#allocation5 + $0x48] sm:$0xff]
    %v105 = vld [vmem:[#allocation5 + $0x50] sm:$0xff]
    %v106 = vld [vmem:[#allocation5 + $0x58] sm:$0xff]
    %v107 = vld [vmem:[#allocation5 + $0x60] sm:$0xff]
    %v108 = vld [vmem:[#allocation5 + $0x68] sm:$0xff]
    %v109 = vld [vmem:[#allocation5 + $0x70] sm:$0xff]
    %v110 = vld [vmem:[#allocation5 + $0x78] sm:$0xff]
    %v111 = vld [vmem:[#allocation5 + $0x80] sm:$0xff]
    %v112 = vld [vmem:[#allocation5 + $0x88] sm:$0xff]
    %v113 = vld [vmem:[#allocation5 + $0x90] sm:$0xff]
    %v114 = vld [vmem:[#allocation5 + $0x98] sm:$0xff]
    %v115 = vld [vmem:[#allocation5 + $0xa0] sm:$0xff]
    %v116 = vld [vmem:[#allocation5 + $0xa8] sm:$0xff]
    %v117 = vld [vmem:[#allocation5 + $0xb0] sm:$0xff]
    %v118 = vld [vmem:[#allocation5 + $0xb8] sm:$0xff]
    %v119 = vld [vmem:[#allocation5 + $0xc0] sm:$0xff]
    %v120 = vld [vmem:[#allocation5 + $0xc8] sm:$0xff]
    %v121 = vld [vmem:[#allocation5 + $0xd0] sm:$0xff]
    %v122 = vld [vmem:[#allocation5 + $0xd8] sm:$0xff]
    %v123 = vld [vmem:[#allocation5 + $0xe0] sm:$0xff]
    %v124 = vld [vmem:[#allocation5 + $0xe8] sm:$0xff]
    %v125 = vld [vmem:[#allocation5 + $0xf0] sm:$0xff]
    %v126 = vld [vmem:[#allocation5 + $0xf8] sm:$0xff]
    %v127 = vld [vmem:[%s3] sm:$0x3]
    %v129 = vperm.slane %v127, 0
    %v130 = vperm.slane %v127, 1
    %133 = vmatpush.msra.mxu0 %v125
    %134 = vmatpush.msra.mxu0 %v123
    %135 = vmatpush.msra.mxu0 %v121
    %136 = vmatpush.msra.mxu0 %v119
    %137 = vmatpush.msra.mxu0 %v117
    %138 = vmatpush.msra.mxu0 %v115
    %139 = vmatpush.msra.mxu0 %v113
    %140 = vmatpush.msra.mxu0 %v111
    %141 = vmatpush.msra.mxu0 %v109
    %142 = vmatpush.msra.mxu0 %v107
    %143 = vmatpush.msra.mxu0 %v105
    %144 = vmatpush.msra.mxu0 %v103
    %145 = vmatpush.msra.mxu0 %v101
    %146 = vmatpush.msra.mxu0 %v99
    %147 = vmatpush.msra.mxu0 %v97
    %148 = vmatpush.msra.mxu0 %v95
    %149 = vmatmul.f32.gmra.mxu0 %v87
    %v150 = vpop.f32.mrf.mxu0
    %v151 = vadd.f32 %v129, %v150
    %152 = vmatmul.f32.gmra.mxu0 %v88
    %v153 = vpop.f32.mrf.mxu0
    %v154 = vadd.f32 %v129, %v153
    %155 = vmatmul.f32.gmra.mxu0 %v89
    %v156 = vpop.f32.mrf.mxu0
    %v157 = vadd.f32 %v129, %v156
    %158 = vmatmul.f32.gmra.mxu0 %v90
    %v159 = vpop.f32.mrf.mxu0
    %v160 = vadd.f32 %v129, %v159
    %161 = vmatmul.f32.gmra.mxu0 %v91
    %v162 = vpop.f32.mrf.mxu0
    %v163 = vadd.f32 %v129, %v162
    %164 = vmatmul.f32.gmra.mxu0 %v92
    %v165 = vpop.f32.mrf.mxu0
    %v166 = vadd.f32 %v129, %v165
    %167 = vmatmul.f32.gmra.mxu0 %v93
    %v168 = vpop.f32.mrf.mxu0
    %v169 = vadd.f32 %v129, %v168
    %170 = vmatmul.f32.gmra.mxu0 %v94
    %v171 = vpop.f32.mrf.mxu0
    %v172 = vadd.f32 %v129, %v171
    %173 = vdwg.mxu0
    %174 = vmatpush.msra.mxu0 %v126
    %175 = vmatpush.msra.mxu0 %v124
    %176 = vmatpush.msra.mxu0 %v122
    %177 = vmatpush.msra.mxu0 %v120
    %178 = vmatpush.msra.mxu0 %v118
    %179 = vmatpush.msra.mxu0 %v116
    %180 = vmatpush.msra.mxu0 %v114
    %181 = vmatpush.msra.mxu0 %v112
    %182 = vmatpush.msra.mxu0 %v110
    %183 = vmatpush.msra.mxu0 %v108
    %184 = vmatpush.msra.mxu0 %v106
    %185 = vmatpush.msra.mxu0 %v104
    %186 = vmatpush.msra.mxu0 %v102
    %187 = vmatpush.msra.mxu0 %v100
    %188 = vmatpush.msra.mxu0 %v98
    %189 = vmatpush.msra.mxu0 %v96
    %190 = vmatmul.f32.gmra.mxu0 %v87
    %v191 = vpop.f32.mrf.mxu0
    %v192 = vadd.f32 %v130, %v191
    %193 = vmatmul.f32.gmra.mxu0 %v88
    %v194 = vpop.f32.mrf.mxu0
    %v195 = vadd.f32 %v130, %v194
    %196 = vmatmul.f32.gmra.mxu0 %v89
    %v197 = vpop.f32.mrf.mxu0
    %v198 = vadd.f32 %v130, %v197
    %199 = vmatmul.f32.gmra.mxu0 %v90
    %v200 = vpop.f32.mrf.mxu0
    %v201 = vadd.f32 %v130, %v200
    %202 = vmatmul.f32.gmra.mxu0 %v91
    %v203 = vpop.f32.mrf.mxu0
    %v204 = vadd.f32 %v130, %v203
    %205 = vmatmul.f32.gmra.mxu0 %v92
    %v206 = vpop.f32.mrf.mxu0
    %v207 = vadd.f32 %v130, %v206
    %208 = vmatmul.f32.gmra.mxu0 %v93
    %v209 = vpop.f32.mrf.mxu0
    %v210 = vadd.f32 %v130, %v209
    %211 = vmatmul.f32.gmra.mxu0 %v94
    %v212 = vpop.f32.mrf.mxu0
    %v213 = vadd.f32 %v130, %v212
    %214 = vdwg.mxu0
    %v215 = vld [vmem:[#allocation7] sm:$0xff]
    %v216 = vld [vmem:[#allocation7 + $0x8] sm:$0xff]
    %v217 = vld [vmem:[#allocation7 + $0x10] sm:$0xff]
    %v218 = vld [vmem:[#allocation7 + $0x18] sm:$0xff]
    %v219 = vld [vmem:[#allocation7 + $0x20] sm:$0xff]
    %v220 = vld [vmem:[#allocation7 + $0x28] sm:$0xff]
    %v221 = vld [vmem:[#allocation7 + $0x30] sm:$0xff]
    %v222 = vld [vmem:[#allocation7 + $0x38] sm:$0xff]
    %v223 = vld [vmem:[#allocation7 + $0x40] sm:$0xff]
    %v224 = vld [vmem:[#allocation7 + $0x48] sm:$0xff]
    %v225 = vld [vmem:[#allocation7 + $0x50] sm:$0xff]
    %v226 = vld [vmem:[#allocation7 + $0x58] sm:$0xff]
    %v227 = vld [vmem:[#allocation7 + $0x60] sm:$0xff]
    %v228 = vld [vmem:[#allocation7 + $0x68] sm:$0xff]
    %v229 = vld [vmem:[#allocation7 + $0x70] sm:$0xff]
    %v230 = vld [vmem:[#allocation7 + $0x78] sm:$0xff]
    %v231 = vxor.u32 %v151, 2147483648
    %v232 = vxor.u32 %v192, 2147483648
    %v233 = vmul.f32 %v231, 1.442695
    %v234 = vpow.pop %v233
    %v235 = vmul.f32 %v232, 1.442695
    %v236 = vpow.pop %v235
    %v237 = vadd.f32 %v234, 1.0
    %v238 = vadd.f32 %v236, 1.0
    %v239 = vrcp.pop %v237
    %v240 = vmul.f32 %v237, %v239
    %v241 = vsub.f32 1.0, %v240
    %v242 = vmul.f32 %v239, %v241
    %v243 = vadd.f32 %v239, %v242
    %vm244 = vweird.f32 %v237
    %vm245 = vweird.f32 %v239
    %vm246 = vmor %vm244, %vm245
    %v247 = vsel %vm246, %v239, %v243
    %v248 = vand.u32 2147483647, %v237
    %vm249 = vcmp.eq.f32.partialorder %v248, 8.507059e+37
    %v250 = vand.u32 %v237, 2147483648
    %v251 = vor.u32 1.1754944e-38, %v250
    %v252 = vsel %vm249, %v251, %v247
    %v253 = vmul.f32 1.0, %v252
    %v254 = vrcp.pop %v238
    %v255 = vmul.f32 %v238, %v254
    %v256 = vsub.f32 1.0, %v255
    %v257 = vmul.f32 %v254, %v256
    %v258 = vadd.f32 %v254, %v257
    %vm259 = vweird.f32 %v238
    %vm260 = vweird.f32 %v254
    %vm261 = vmor %vm259, %vm260
    %v262 = vsel %vm261, %v254, %v258
    %v263 = vand.u32 2147483647, %v238
    %vm264 = vcmp.eq.f32.partialorder %v263, 8.507059e+37
    %v265 = vand.u32 %v238, 2147483648
    %v266 = vor.u32 1.1754944e-38, %v265
    %v267 = vsel %vm264, %v266, %v262
    %v268 = vmul.f32 1.0, %v267
    %v269 = vtanh.pop %v192
    %v270 = vmul.f32 %v253, 0.0
    %v271 = vmul.f32 %v253, %v269
    %273 = vrot.lane.b32.xlu0 %v271, 64
    %v274 = vpop.permute.xlu0 %273
    %v276 = vadd.f32 %v270, %v274
    %v277 = vtanh.pop %v276
    %v278 = vmul.f32 %v268, %v277
    %280 = vrot.lane.b32.xlu0 %v278, 64
    %v281 = vpop.permute.xlu0 %280
    %vm282 = vcmask 523264
    %v283 = vsel %vm282, %v281, 0
    %285 = vmatpush.msra.mxu0 0.0
    %286 = vmatpush.msra.mxu0 0.0
    %287 = vmatpush.msra.mxu0 0.0
    %288 = vmatpush.msra.mxu0 0.0
    %289 = vmatpush.msra.mxu0 0.0
    %290 = vmatpush.msra.mxu0 0.0
    %291 = vmatpush.msra.mxu0 0.0
    %292 = vmatpush.msra.mxu0 0.0
    %293 = vmatpush.msra.mxu0 %v229
    %294 = vmatpush.msra.mxu0 %v227
    %295 = vmatpush.msra.mxu0 %v225
    %296 = vmatpush.msra.mxu0 %v223
    %297 = vmatpush.msra.mxu0 %v221
    %298 = vmatpush.msra.mxu0 %v219
    %299 = vmatpush.msra.mxu0 %v217
    %300 = vmatpush.msra.mxu0 %v215
    %301 = vmatmul.f32.gmra.mxu0 %v283
    %v302 = vpop.f32.mrf.mxu0
    %v303 = vadd.f32 0.0, %v302
    %304 = vdwg.mxu0
    %305 = vmatpush.msra.mxu0 0.0
    %306 = vmatpush.msra.mxu0 0.0
    %307 = vmatpush.msra.mxu0 0.0
    %308 = vmatpush.msra.mxu0 0.0
    %309 = vmatpush.msra.mxu0 0.0
    %310 = vmatpush.msra.mxu0 0.0
    %311 = vmatpush.msra.mxu0 0.0
    %312 = vmatpush.msra.mxu0 0.0
    %313 = vmatpush.msra.mxu0 %v230
    %314 = vmatpush.msra.mxu0 %v228
    %315 = vmatpush.msra.mxu0 %v226
    %316 = vmatpush.msra.mxu0 %v224
    %317 = vmatpush.msra.mxu0 %v222
    %318 = vmatpush.msra.mxu0 %v220
    %319 = vmatpush.msra.mxu0 %v218
    %320 = vmatpush.msra.mxu0 %v216
    %321 = vmatmul.f32.gmra.mxu0 %v283
    %v322 = vpop.f32.mrf.mxu0
    %v323 = vadd.f32 0.0, %v322
    %324 = vdwg.mxu0
    %v325 = vadd.f32 %v154, %v303
    %v326 = vadd.f32 %v195, %v323
    %v327 = vxor.u32 %v325, 2147483648
    %v328 = vxor.u32 %v326, 2147483648
    %v329 = vmul.f32 %v327, 1.442695
    %v330 = vpow.pop %v329
    %v331 = vmul.f32 %v328, 1.442695
    %v332 = vpow.pop %v331
    %v333 = vadd.f32 %v330, 1.0
    %v334 = vadd.f32 %v332, 1.0
    %v335 = vrcp.pop %v333
    %v336 = vmul.f32 %v333, %v335
    %v337 = vsub.f32 1.0, %v336
    %v338 = vmul.f32 %v335, %v337
    %v339 = vadd.f32 %v335, %v338
    %vm340 = vweird.f32 %v333
    %vm341 = vweird.f32 %v335
    %vm342 = vmor %vm340, %vm341
    %v343 = vsel %vm342, %v335, %v339
    %v344 = vand.u32 2147483647, %v333
    %vm345 = vcmp.eq.f32.partialorder %v344, 8.507059e+37
    %v346 = vand.u32 %v333, 2147483648
    %v347 = vor.u32 1.1754944e-38, %v346
    %v348 = vsel %vm345, %v347, %v343
    %v349 = vmul.f32 1.0, %v348
    %v350 = vrcp.pop %v334
    %v351 = vmul.f32 %v334, %v350
    %v352 = vsub.f32 1.0, %v351
    %v353 = vmul.f32 %v350, %v352
    %v354 = vadd.f32 %v350, %v353
    %vm355 = vweird.f32 %v334
    %vm356 = vweird.f32 %v350
    %vm357 = vmor %vm355, %vm356
    %v358 = vsel %vm357, %v350, %v354
    %v359 = vand.u32 2147483647, %v334
    %vm360 = vcmp.eq.f32.partialorder %v359, 8.507059e+37
    %v361 = vand.u32 %v334, 2147483648
    %v362 = vor.u32 1.1754944e-38, %v361
    %v363 = vsel %vm360, %v362, %v358
    %v364 = vmul.f32 1.0, %v363
    %v365 = vtanh.pop %v326
    %v366 = vmul.f32 %v349, %v276
    %v367 = vmul.f32 %v349, %v365
    %369 = vrot.lane.b32.xlu0 %v367, 64
    %v370 = vpop.permute.xlu0 %369
    %v372 = vadd.f32 %v366, %v370
    %v373 = vtanh.pop %v372
    %v374 = vmul.f32 %v364, %v373
    %376 = vrot.lane.b32.xlu0 %v374, 64
    %v377 = vpop.permute.xlu0 %376
    %v378 = vsel %vm282, %v377, 0
    %380 = vmatpush.msra.mxu0 0.0
    %381 = vmatpush.msra.mxu0 0.0
    %382 = vmatpush.msra.mxu0 0.0
    %383 = vmatpush.msra.mxu0 0.0
    %384 = vmatpush.msra.mxu0 0.0
    %385 = vmatpush.msra.mxu0 0.0
    %386 = vmatpush.msra.mxu0 0.0
    %387 = vmatpush.msra.mxu0 0.0
    %388 = vmatpush.msra.mxu0 %v229
    %389 = vmatpush.msra.mxu0 %v227
    %390 = vmatpush.msra.mxu0 %v225
    %391 = vmatpush.msra.mxu0 %v223
    %392 = vmatpush.msra.mxu0 %v221
    %393 = vmatpush.msra.mxu0 %v219
    %394 = vmatpush.msra.mxu0 %v217
    %395 = vmatpush.msra.mxu0 %v215
    %396 = vmatmul.f32.gmra.mxu0 %v378
    %v397 = vpop.f32.mrf.mxu0
    %v398 = vadd.f32 0.0, %v397
    %399 = vdwg.mxu0
    %400 = vmatpush.msra.mxu0 0.0
    %401 = vmatpush.msra.mxu0 0.0
    %402 = vmatpush.msra.mxu0 0.0
    %403 = vmatpush.msra.mxu0 0.0
    %404 = vmatpush.msra.mxu0 0.0
    %405 = vmatpush.msra.mxu0 0.0
    %406 = vmatpush.msra.mxu0 0.0
    %407 = vmatpush.msra.mxu0 0.0
    %408 = vmatpush.msra.mxu0 %v230
    %409 = vmatpush.msra.mxu0 %v228
    %410 = vmatpush.msra.mxu0 %v226
    %411 = vmatpush.msra.mxu0 %v224
    %412 = vmatpush.msra.mxu0 %v222
    %413 = vmatpush.msra.mxu0 %v220
    %414 = vmatpush.msra.mxu0 %v218
    %415 = vmatpush.msra.mxu0 %v216
    %416 = vmatmul.f32.gmra.mxu0 %v378
    %v417 = vpop.f32.mrf.mxu0
    %v418 = vadd.f32 0.0, %v417
    %419 = vdwg.mxu0
    %v420 = vadd.f32 %v157, %v398
    %v421 = vadd.f32 %v198, %v418
    %v422 = vxor.u32 %v420, 2147483648
    %v423 = vxor.u32 %v421, 2147483648
    %v424 = vmul.f32 %v422, 1.442695
    %v425 = vpow.pop %v424
    %v426 = vmul.f32 %v423, 1.442695
    %v427 = vpow.pop %v426
    %v428 = vadd.f32 %v425, 1.0
    %v429 = vadd.f32 %v427, 1.0
    %v430 = vrcp.pop %v428
    %v431 = vmul.f32 %v428, %v430
    %v432 = vsub.f32 1.0, %v431
    %v433 = vmul.f32 %v430, %v432
    %v434 = vadd.f32 %v430, %v433
    %vm435 = vweird.f32 %v428
    %vm436 = vweird.f32 %v430
    %vm437 = vmor %vm435, %vm436
    %v438 = vsel %vm437, %v430, %v434
    %v439 = vand.u32 2147483647, %v428
    %vm440 = vcmp.eq.f32.partialorder %v439, 8.507059e+37
    %v441 = vand.u32 %v428, 2147483648
    %v442 = vor.u32 1.1754944e-38, %v441
    %v443 = vsel %vm440, %v442, %v438
    %v444 = vmul.f32 1.0, %v443
    %v445 = vrcp.pop %v429
    %v446 = vmul.f32 %v429, %v445
    %v447 = vsub.f32 1.0, %v446
    %v448 = vmul.f32 %v445, %v447
    %v449 = vadd.f32 %v445, %v448
    %vm450 = vweird.f32 %v429
    %vm451 = vweird.f32 %v445
    %vm452 = vmor %vm450, %vm451
    %v453 = vsel %vm452, %v445, %v449
    %v454 = vand.u32 2147483647, %v429
    %vm455 = vcmp.eq.f32.partialorder %v454, 8.507059e+37
    %v456 = vand.u32 %v429, 2147483648
    %v457 = vor.u32 1.1754944e-38, %v456
    %v458 = vsel %vm455, %v457, %v453
    %v459 = vmul.f32 1.0, %v458
    %v460 = vtanh.pop %v421
    %v461 = vmul.f32 %v444, %v372
    %v462 = vmul.f32 %v444, %v460
    %464 = vrot.lane.b32.xlu0 %v462, 64
    %v465 = vpop.permute.xlu0 %464
    %v467 = vadd.f32 %v461, %v465
    %v468 = vtanh.pop %v467
    %v469 = vmul.f32 %v459, %v468
    %471 = vrot.lane.b32.xlu0 %v469, 64
    %v472 = vpop.permute.xlu0 %471
    %v473 = vsel %vm282, %v472, 0
    %475 = vmatpush.msra.mxu0 0.0
    %476 = vmatpush.msra.mxu0 0.0
    %477 = vmatpush.msra.mxu0 0.0
    %478 = vmatpush.msra.mxu0 0.0
    %479 = vmatpush.msra.mxu0 0.0
    %480 = vmatpush.msra.mxu0 0.0
    %481 = vmatpush.msra.mxu0 0.0
    %482 = vmatpush.msra.mxu0 0.0
    %483 = vmatpush.msra.mxu0 %v229
    %484 = vmatpush.msra.mxu0 %v227
    %485 = vmatpush.msra.mxu0 %v225
    %486 = vmatpush.msra.mxu0 %v223
    %487 = vmatpush.msra.mxu0 %v221
    %488 = vmatpush.msra.mxu0 %v219
    %489 = vmatpush.msra.mxu0 %v217
    %490 = vmatpush.msra.mxu0 %v215
    %491 = vmatmul.f32.gmra.mxu0 %v473
    %v492 = vpop.f32.mrf.mxu0
    %v493 = vadd.f32 0.0, %v492
    %494 = vdwg.mxu0
    %495 = vmatpush.msra.mxu0 0.0
    %496 = vmatpush.msra.mxu0 0.0
    %497 = vmatpush.msra.mxu0 0.0
    %498 = vmatpush.msra.mxu0 0.0
    %499 = vmatpush.msra.mxu0 0.0
    %500 = vmatpush.msra.mxu0 0.0
    %501 = vmatpush.msra.mxu0 0.0
    %502 = vmatpush.msra.mxu0 0.0
    %503 = vmatpush.msra.mxu0 %v230
    %504 = vmatpush.msra.mxu0 %v228
    %505 = vmatpush.msra.mxu0 %v226
    %506 = vmatpush.msra.mxu0 %v224
    %507 = vmatpush.msra.mxu0 %v222
    %508 = vmatpush.msra.mxu0 %v220
    %509 = vmatpush.msra.mxu0 %v218
    %510 = vmatpush.msra.mxu0 %v216
    %511 = vmatmul.f32.gmra.mxu0 %v473
    %v512 = vpop.f32.mrf.mxu0
    %v513 = vadd.f32 0.0, %v512
    %514 = vdwg.mxu0
    %v515 = vadd.f32 %v160, %v493
    %v516 = vadd.f32 %v201, %v513
    %v517 = vxor.u32 %v515, 2147483648
    %v518 = vxor.u32 %v516, 2147483648
    %v519 = vmul.f32 %v517, 1.442695
    %v520 = vpow.pop %v519
    %v521 = vmul.f32 %v518, 1.442695
    %v522 = vpow.pop %v521
    %v523 = vadd.f32 %v520, 1.0
    %v524 = vadd.f32 %v522, 1.0
    %v525 = vrcp.pop %v523
    %v526 = vmul.f32 %v523, %v525
    %v527 = vsub.f32 1.0, %v526
    %v528 = vmul.f32 %v525, %v527
    %v529 = vadd.f32 %v525, %v528
    %vm530 = vweird.f32 %v523
    %vm531 = vweird.f32 %v525
    %vm532 = vmor %vm530, %vm531
    %v533 = vsel %vm532, %v525, %v529
    %v534 = vand.u32 2147483647, %v523
    %vm535 = vcmp.eq.f32.partialorder %v534, 8.507059e+37
    %v536 = vand.u32 %v523, 2147483648
    %v537 = vor.u32 1.1754944e-38, %v536
    %v538 = vsel %vm535, %v537, %v533
    %v539 = vmul.f32 1.0, %v538
    %v540 = vrcp.pop %v524
    %v541 = vmul.f32 %v524, %v540
    %v542 = vsub.f32 1.0, %v541
    %v543 = vmul.f32 %v540, %v542
    %v544 = vadd.f32 %v540, %v543
    %vm545 = vweird.f32 %v524
    %vm546 = vweird.f32 %v540
    %vm547 = vmor %vm545, %vm546
    %v548 = vsel %vm547, %v540, %v544
    %v549 = vand.u32 2147483647, %v524
    %vm550 = vcmp.eq.f32.partialorder %v549, 8.507059e+37
    %v551 = vand.u32 %v524, 2147483648
    %v552 = vor.u32 1.1754944e-38, %v551
    %v553 = vsel %vm550, %v552, %v548
    %v554 = vmul.f32 1.0, %v553
    %v555 = vtanh.pop %v516
    %v556 = vmul.f32 %v539, %v467
    %v557 = vmul.f32 %v539, %v555
    %559 = vrot.lane.b32.xlu0 %v557, 64
    %v560 = vpop.permute.xlu0 %559
    %v562 = vadd.f32 %v556, %v560
    %v563 = vtanh.pop %v562
    %v564 = vmul.f32 %v554, %v563
    %566 = vrot.lane.b32.xlu0 %v564, 64
    %v567 = vpop.permute.xlu0 %566
    %v568 = vsel %vm282, %v567, 0
    %570 = vmatpush.msra.mxu0 0.0
    %571 = vmatpush.msra.mxu0 0.0
    %572 = vmatpush.msra.mxu0 0.0
    %573 = vmatpush.msra.mxu0 0.0
    %574 = vmatpush.msra.mxu0 0.0
    %575 = vmatpush.msra.mxu0 0.0
    %576 = vmatpush.msra.mxu0 0.0
    %577 = vmatpush.msra.mxu0 0.0
    %578 = vmatpush.msra.mxu0 %v229
    %579 = vmatpush.msra.mxu0 %v227
    %580 = vmatpush.msra.mxu0 %v225
    %581 = vmatpush.msra.mxu0 %v223
    %582 = vmatpush.msra.mxu0 %v221
    %583 = vmatpush.msra.mxu0 %v219
    %584 = vmatpush.msra.mxu0 %v217
    %585 = vmatpush.msra.mxu0 %v215
    %586 = vmatmul.f32.gmra.mxu0 %v568
    %v587 = vpop.f32.mrf.mxu0
    %v588 = vadd.f32 0.0, %v587
    %589 = vdwg.mxu0
    %590 = vmatpush.msra.mxu0 0.0
    %591 = vmatpush.msra.mxu0 0.0
    %592 = vmatpush.msra.mxu0 0.0
    %593 = vmatpush.msra.mxu0 0.0
    %594 = vmatpush.msra.mxu0 0.0
    %595 = vmatpush.msra.mxu0 0.0
    %596 = vmatpush.msra.mxu0 0.0
    %597 = vmatpush.msra.mxu0 0.0
    %598 = vmatpush.msra.mxu0 %v230
    %599 = vmatpush.msra.mxu0 %v228
    %600 = vmatpush.msra.mxu0 %v226
    %601 = vmatpush.msra.mxu0 %v224
    %602 = vmatpush.msra.mxu0 %v222
    %603 = vmatpush.msra.mxu0 %v220
    %604 = vmatpush.msra.mxu0 %v218
    %605 = vmatpush.msra.mxu0 %v216
    %606 = vmatmul.f32.gmra.mxu0 %v568
    %v607 = vpop.f32.mrf.mxu0
    %v608 = vadd.f32 0.0, %v607
    %609 = vdwg.mxu0
    %v610 = vadd.f32 %v163, %v588
    %v611 = vadd.f32 %v204, %v608
    %v612 = vxor.u32 %v610, 2147483648
    %v613 = vxor.u32 %v611, 2147483648
    %v614 = vmul.f32 %v612, 1.442695
    %v615 = vpow.pop %v614
    %v616 = vmul.f32 %v613, 1.442695
    %v617 = vpow.pop %v616
    %v618 = vadd.f32 %v615, 1.0
    %v619 = vadd.f32 %v617, 1.0
    %v620 = vrcp.pop %v618
    %v621 = vmul.f32 %v618, %v620
    %v622 = vsub.f32 1.0, %v621
    %v623 = vmul.f32 %v620, %v622
    %v624 = vadd.f32 %v620, %v623
    %vm625 = vweird.f32 %v618
    %vm626 = vweird.f32 %v620
    %vm627 = vmor %vm625, %vm626
    %v628 = vsel %vm627, %v620, %v624
    %v629 = vand.u32 2147483647, %v618
    %vm630 = vcmp.eq.f32.partialorder %v629, 8.507059e+37
    %v631 = vand.u32 %v618, 2147483648
    %v632 = vor.u32 1.1754944e-38, %v631
    %v633 = vsel %vm630, %v632, %v628
    %v634 = vmul.f32 1.0, %v633
    %v635 = vrcp.pop %v619
    %v636 = vmul.f32 %v619, %v635
    %v637 = vsub.f32 1.0, %v636
    %v638 = vmul.f32 %v635, %v637
    %v639 = vadd.f32 %v635, %v638
    %vm640 = vweird.f32 %v619
    %vm641 = vweird.f32 %v635
    %vm642 = vmor %vm640, %vm641
    %v643 = vsel %vm642, %v635, %v639
    %v644 = vand.u32 2147483647, %v619
    %vm645 = vcmp.eq.f32.partialorder %v644, 8.507059e+37
    %v646 = vand.u32 %v619, 2147483648
    %v647 = vor.u32 1.1754944e-38, %v646
    %v648 = vsel %vm645, %v647, %v643
    %v649 = vmul.f32 1.0, %v648
    %v650 = vtanh.pop %v611
    %v651 = vmul.f32 %v634, %v562
    %v652 = vmul.f32 %v634, %v650
    %654 = vrot.lane.b32.xlu0 %v652, 64
    %v655 = vpop.permute.xlu0 %654
    %v657 = vadd.f32 %v651, %v655
    %v658 = vtanh.pop %v657
    %v659 = vmul.f32 %v649, %v658
    %661 = vrot.lane.b32.xlu0 %v659, 64
    %v662 = vpop.permute.xlu0 %661
    %v663 = vsel %vm282, %v662, 0
    %665 = vmatpush.msra.mxu0 0.0
    %666 = vmatpush.msra.mxu0 0.0
    %667 = vmatpush.msra.mxu0 0.0
    %668 = vmatpush.msra.mxu0 0.0
    %669 = vmatpush.msra.mxu0 0.0
    %670 = vmatpush.msra.mxu0 0.0
    %671 = vmatpush.msra.mxu0 0.0
    %672 = vmatpush.msra.mxu0 0.0
    %673 = vmatpush.msra.mxu0 %v229
    %674 = vmatpush.msra.mxu0 %v227
    %675 = vmatpush.msra.mxu0 %v225
    %676 = vmatpush.msra.mxu0 %v223
    %677 = vmatpush.msra.mxu0 %v221
    %678 = vmatpush.msra.mxu0 %v219
    %679 = vmatpush.msra.mxu0 %v217
    %680 = vmatpush.msra.mxu0 %v215
    %681 = vmatmul.f32.gmra.mxu0 %v663
    %v682 = vpop.f32.mrf.mxu0
    %v683 = vadd.f32 0.0, %v682
    %684 = vdwg.mxu0
    %685 = vmatpush.msra.mxu0 0.0
    %686 = vmatpush.msra.mxu0 0.0
    %687 = vmatpush.msra.mxu0 0.0
    %688 = vmatpush.msra.mxu0 0.0
    %689 = vmatpush.msra.mxu0 0.0
    %690 = vmatpush.msra.mxu0 0.0
    %691 = vmatpush.msra.mxu0 0.0
    %692 = vmatpush.msra.mxu0 0.0
    %693 = vmatpush.msra.mxu0 %v230
    %694 = vmatpush.msra.mxu0 %v228
    %695 = vmatpush.msra.mxu0 %v226
    %696 = vmatpush.msra.mxu0 %v224
    %697 = vmatpush.msra.mxu0 %v222
    %698 = vmatpush.msra.mxu0 %v220
    %699 = vmatpush.msra.mxu0 %v218
    %700 = vmatpush.msra.mxu0 %v216
    %701 = vmatmul.f32.gmra.mxu0 %v663
    %v702 = vpop.f32.mrf.mxu0
    %v703 = vadd.f32 0.0, %v702
    %704 = vdwg.mxu0
    %v705 = vadd.f32 %v166, %v683
    %v706 = vadd.f32 %v207, %v703
    %v707 = vxor.u32 %v705, 2147483648
    %v708 = vxor.u32 %v706, 2147483648
    %v709 = vmul.f32 %v707, 1.442695
    %v710 = vpow.pop %v709
    %v711 = vmul.f32 %v708, 1.442695
    %v712 = vpow.pop %v711
    %v713 = vadd.f32 %v710, 1.0
    %v714 = vadd.f32 %v712, 1.0
    %v715 = vrcp.pop %v713
    %v716 = vmul.f32 %v713, %v715
    %v717 = vsub.f32 1.0, %v716
    %v718 = vmul.f32 %v715, %v717
    %v719 = vadd.f32 %v715, %v718
    %vm720 = vweird.f32 %v713
    %vm721 = vweird.f32 %v715
    %vm722 = vmor %vm720, %vm721
    %v723 = vsel %vm722, %v715, %v719
    %v724 = vand.u32 2147483647, %v713
    %vm725 = vcmp.eq.f32.partialorder %v724, 8.507059e+37
    %v726 = vand.u32 %v713, 2147483648
    %v727 = vor.u32 1.1754944e-38, %v726
    %v728 = vsel %vm725, %v727, %v723
    %v729 = vmul.f32 1.0, %v728
    %v730 = vrcp.pop %v714
    %v731 = vmul.f32 %v714, %v730
    %v732 = vsub.f32 1.0, %v731
    %v733 = vmul.f32 %v730, %v732
    %v734 = vadd.f32 %v730, %v733
    %vm735 = vweird.f32 %v714
    %vm736 = vweird.f32 %v730
    %vm737 = vmor %vm735, %vm736
    %v738 = vsel %vm737, %v730, %v734
    %v739 = vand.u32 2147483647, %v714
    %vm740 = vcmp.eq.f32.partialorder %v739, 8.507059e+37
    %v741 = vand.u32 %v714, 2147483648
    %v742 = vor.u32 1.1754944e-38, %v741
    %v743 = vsel %vm740, %v742, %v738
    %v744 = vmul.f32 1.0, %v743
    %v745 = vtanh.pop %v706
    %v746 = vmul.f32 %v729, %v657
    %v747 = vmul.f32 %v729, %v745
    %749 = vrot.lane.b32.xlu0 %v747, 64
    %v750 = vpop.permute.xlu0 %749
    %v752 = vadd.f32 %v746, %v750
    %v753 = vtanh.pop %v752
    %v754 = vmul.f32 %v744, %v753
    %756 = vrot.lane.b32.xlu0 %v754, 64
    %v757 = vpop.permute.xlu0 %756
    %v758 = vsel %vm282, %v757, 0
    %760 = vmatpush.msra.mxu0 0.0
    %761 = vmatpush.msra.mxu0 0.0
    %762 = vmatpush.msra.mxu0 0.0
    %763 = vmatpush.msra.mxu0 0.0
    %764 = vmatpush.msra.mxu0 0.0
    %765 = vmatpush.msra.mxu0 0.0
    %766 = vmatpush.msra.mxu0 0.0
    %767 = vmatpush.msra.mxu0 0.0
    %768 = vmatpush.msra.mxu0 %v229
    %769 = vmatpush.msra.mxu0 %v227
    %770 = vmatpush.msra.mxu0 %v225
    %771 = vmatpush.msra.mxu0 %v223
    %772 = vmatpush.msra.mxu0 %v221
    %773 = vmatpush.msra.mxu0 %v219
    %774 = vmatpush.msra.mxu0 %v217
    %775 = vmatpush.msra.mxu0 %v215
    %776 = vmatmul.f32.gmra.mxu0 %v758
    %v777 = vpop.f32.mrf.mxu0
    %v778 = vadd.f32 0.0, %v777
    %779 = vdwg.mxu0
    %780 = vmatpush.msra.mxu0 0.0
    %781 = vmatpush.msra.mxu0 0.0
    %782 = vmatpush.msra.mxu0 0.0
    %783 = vmatpush.msra.mxu0 0.0
    %784 = vmatpush.msra.mxu0 0.0
    %785 = vmatpush.msra.mxu0 0.0
    %786 = vmatpush.msra.mxu0 0.0
    %787 = vmatpush.msra.mxu0 0.0
    %788 = vmatpush.msra.mxu0 %v230
    %789 = vmatpush.msra.mxu0 %v228
    %790 = vmatpush.msra.mxu0 %v226
    %791 = vmatpush.msra.mxu0 %v224
    %792 = vmatpush.msra.mxu0 %v222
    %793 = vmatpush.msra.mxu0 %v220
    %794 = vmatpush.msra.mxu0 %v218
    %795 = vmatpush.msra.mxu0 %v216
    %796 = vmatmul.f32.gmra.mxu0 %v758
    %v797 = vpop.f32.mrf.mxu0
    %v798 = vadd.f32 0.0, %v797
    %799 = vdwg.mxu0
    %v800 = vadd.f32 %v169, %v778
    %v801 = vadd.f32 %v210, %v798
    %v802 = vxor.u32 %v800, 2147483648
    %v803 = vxor.u32 %v801, 2147483648
    %v804 = vmul.f32 %v802, 1.442695
    %v805 = vpow.pop %v804
    %v806 = vmul.f32 %v803, 1.442695
    %v807 = vpow.pop %v806
    %v808 = vadd.f32 %v805, 1.0
    %v809 = vadd.f32 %v807, 1.0
    %v810 = vrcp.pop %v808
    %v811 = vmul.f32 %v808, %v810
    %v812 = vsub.f32 1.0, %v811
    %v813 = vmul.f32 %v810, %v812
    %v814 = vadd.f32 %v810, %v813
    %vm815 = vweird.f32 %v808
    %vm816 = vweird.f32 %v810
    %vm817 = vmor %vm815, %vm816
    %v818 = vsel %vm817, %v810, %v814
    %v819 = vand.u32 2147483647, %v808
    %vm820 = vcmp.eq.f32.partialorder %v819, 8.507059e+37
    %v821 = vand.u32 %v808, 2147483648
    %v822 = vor.u32 1.1754944e-38, %v821
    %v823 = vsel %vm820, %v822, %v818
    %v824 = vmul.f32 1.0, %v823
    %v825 = vrcp.pop %v809
    %v826 = vmul.f32 %v809, %v825
    %v827 = vsub.f32 1.0, %v826
    %v828 = vmul.f32 %v825, %v827
    %v829 = vadd.f32 %v825, %v828
    %vm830 = vweird.f32 %v809
    %vm831 = vweird.f32 %v825
    %vm832 = vmor %vm830, %vm831
    %v833 = vsel %vm832, %v825, %v829
    %v834 = vand.u32 2147483647, %v809
    %vm835 = vcmp.eq.f32.partialorder %v834, 8.507059e+37
    %v836 = vand.u32 %v809, 2147483648
    %v837 = vor.u32 1.1754944e-38, %v836
    %v838 = vsel %vm835, %v837, %v833
    %v839 = vmul.f32 1.0, %v838
    %v840 = vtanh.pop %v801
    %v841 = vmul.f32 %v824, %v752
    %v842 = vmul.f32 %v824, %v840
    %844 = vrot.lane.b32.xlu0 %v842, 64
    %v845 = vpop.permute.xlu0 %844
    %v847 = vadd.f32 %v841, %v845
    %v848 = vtanh.pop %v847
    %v849 = vmul.f32 %v839, %v848
    %851 = vrot.lane.b32.xlu0 %v849, 64
    %v852 = vpop.permute.xlu0 %851
    %v853 = vsel %vm282, %v852, 0
    %855 = vmatpush.msra.mxu0 0.0
    %856 = vmatpush.msra.mxu0 0.0
    %857 = vmatpush.msra.mxu0 0.0
    %858 = vmatpush.msra.mxu0 0.0
    %859 = vmatpush.msra.mxu0 0.0
    %860 = vmatpush.msra.mxu0 0.0
    %861 = vmatpush.msra.mxu0 0.0
    %862 = vmatpush.msra.mxu0 0.0
    %863 = vmatpush.msra.mxu0 %v229
    %864 = vmatpush.msra.mxu0 %v227
    %865 = vmatpush.msra.mxu0 %v225
    %866 = vmatpush.msra.mxu0 %v223
    %867 = vmatpush.msra.mxu0 %v221
    %868 = vmatpush.msra.mxu0 %v219
    %869 = vmatpush.msra.mxu0 %v217
    %870 = vmatpush.msra.mxu0 %v215
    %871 = vmatmul.f32.gmra.mxu0 %v853
    %v872 = vpop.f32.mrf.mxu0
    %v873 = vadd.f32 0.0, %v872
    %874 = vdwg.mxu0
    %875 = vmatpush.msra.mxu0 0.0
    %876 = vmatpush.msra.mxu0 0.0
    %877 = vmatpush.msra.mxu0 0.0
    %878 = vmatpush.msra.mxu0 0.0
    %879 = vmatpush.msra.mxu0 0.0
    %880 = vmatpush.msra.mxu0 0.0
    %881 = vmatpush.msra.mxu0 0.0
    %882 = vmatpush.msra.mxu0 0.0
    %883 = vmatpush.msra.mxu0 %v230
    %884 = vmatpush.msra.mxu0 %v228
    %885 = vmatpush.msra.mxu0 %v226
    %886 = vmatpush.msra.mxu0 %v224
    %887 = vmatpush.msra.mxu0 %v222
    %888 = vmatpush.msra.mxu0 %v220
    %889 = vmatpush.msra.mxu0 %v218
    %890 = vmatpush.msra.mxu0 %v216
    %891 = vmatmul.f32.gmra.mxu0 %v853
    %v892 = vpop.f32.mrf.mxu0
    %v893 = vadd.f32 0.0, %v892
    %894 = vdwg.mxu0
    %v895 = vadd.f32 %v172, %v873
    %v896 = vadd.f32 %v213, %v893
    %v897 = vxor.u32 %v895, 2147483648
    %v898 = vxor.u32 %v896, 2147483648
    %v899 = vmul.f32 %v897, 1.442695
    %v900 = vpow.pop %v899
    %v901 = vmul.f32 %v898, 1.442695
    %v902 = vpow.pop %v901
    %v903 = vadd.f32 %v900, 1.0
    %v904 = vadd.f32 %v902, 1.0
    %v905 = vrcp.pop %v903
    %v906 = vmul.f32 %v903, %v905
    %v907 = vsub.f32 1.0, %v906
    %v908 = vmul.f32 %v905, %v907
    %v909 = vadd.f32 %v905, %v908
    %vm910 = vweird.f32 %v903
    %vm911 = vweird.f32 %v905
    %vm912 = vmor %vm910, %vm911
    %v913 = vsel %vm912, %v905, %v909
    %v914 = vand.u32 2147483647, %v903
    %vm915 = vcmp.eq.f32.partialorder %v914, 8.507059e+37
    %v916 = vand.u32 %v903, 2147483648
    %v917 = vor.u32 1.1754944e-38, %v916
    %v918 = vsel %vm915, %v917, %v913
    %v919 = vmul.f32 1.0, %v918
    %v920 = vrcp.pop %v904
    %v921 = vmul.f32 %v904, %v920
    %v922 = vsub.f32 1.0, %v921
    %v923 = vmul.f32 %v920, %v922
    %v924 = vadd.f32 %v920, %v923
    %vm925 = vweird.f32 %v904
    %vm926 = vweird.f32 %v920
    %vm927 = vmor %vm925, %vm926
    %v928 = vsel %vm927, %v920, %v924
    %v929 = vand.u32 2147483647, %v904
    %vm930 = vcmp.eq.f32.partialorder %v929, 8.507059e+37
    %v931 = vand.u32 %v904, 2147483648
    %v932 = vor.u32 1.1754944e-38, %v931
    %v933 = vsel %vm930, %v932, %v928
    %v934 = vmul.f32 1.0, %v933
    %v935 = vtanh.pop %v896
    %v936 = vmul.f32 %v919, %v847
    %v937 = vmul.f32 %v919, %v935
    %939 = vrot.lane.b32.xlu0 %v937, 64
    %v940 = vpop.permute.xlu0 %939
    %v942 = vadd.f32 %v936, %v940
    %v943 = vtanh.pop %v942
    %v944 = vmul.f32 %v934, %v943
    %v945 = vlaneseq
    %v946 = vand.u32 %v945, 127
    %vm947 = vcmp.lt.s32.totalorder %v946, 32
    %950 = vrot.lane.b32.xlu0 %v944, 64
    %v951 = vpop.permute.xlu0 %950
    %v953 = vsel %vm947, %v281, %v951
    %v956 = vsel %vm947, %v377, %v852
    %v959 = vsel %vm947, %v472, %v757
    %v962 = vsel %vm947, %v567, %v662
    %v963 = vsel %vm947, %v662, %v567
    %v964 = vsel %vm947, %v757, %v472
    %v965 = vsel %vm947, %v852, %v377
    %v966 = vsel %vm947, %v951, %v281
    %v967 = vld [vmem:[#allocation8] sm:$0xff]
    %v968 = vld [vmem:[#allocation8 + $0x8] sm:$0xff]
    %v969 = vld [vmem:[#allocation8 + $0x10] sm:$0xff]
    %v970 = vld [vmem:[#allocation8 + $0x18] sm:$0xff]
    %v971 = vld [vmem:[#allocation8 + $0x20] sm:$0xff]
    %v972 = vld [vmem:[#allocation8 + $0x28] sm:$0xff]
    %v973 = vld [vmem:[#allocation8 + $0x30] sm:$0xff]
    %v974 = vld [vmem:[#allocation8 + $0x38] sm:$0xff]
    %v975 = vld [vmem:[%s5] sm:$0x1]
    %v977 = vperm.slane %v975, 0
    %v980 = vsel %vm282, %v953, 0
    %v983 = vsel %vm282, %v956, 0
    %v986 = vsel %vm282, %v959, 0
    %v989 = vsel %vm282, %v962, 0
    %v992 = vsel %vm282, %v963, 0
    %v995 = vsel %vm282, %v964, 0
    %v998 = vsel %vm282, %v965, 0
    %v1001 = vsel %vm282, %v966, 0
    %1003 = vmatpush.msra.mxu0 0.0
    %1004 = vmatpush.msra.mxu0 0.0
    %1005 = vmatpush.msra.mxu0 0.0
    %1006 = vmatpush.msra.mxu0 0.0
    %1007 = vmatpush.msra.mxu0 0.0
    %1008 = vmatpush.msra.mxu0 0.0
    %1009 = vmatpush.msra.mxu0 0.0
    %1010 = vmatpush.msra.mxu0 0.0
    %1011 = vmatpush.msra.mxu0 %v974
    %1012 = vmatpush.msra.mxu0 %v973
    %1013 = vmatpush.msra.mxu0 %v972
    %1014 = vmatpush.msra.mxu0 %v971
    %1015 = vmatpush.msra.mxu0 %v970
    %1016 = vmatpush.msra.mxu0 %v969
    %1017 = vmatpush.msra.mxu0 %v968
    %1018 = vmatpush.msra.mxu0 %v967
    %1019 = vmatmul.f32.gmra.mxu0 %v980
    %v1020 = vpop.f32.mrf.mxu0
    %v1021 = vadd.f32 %v977, %v1020
    %1022 = vmatmul.f32.gmra.mxu0 %v983
    %v1023 = vpop.f32.mrf.mxu0
    %v1024 = vadd.f32 %v977, %v1023
    %1025 = vmatmul.f32.gmra.mxu0 %v986
    %v1026 = vpop.f32.mrf.mxu0
    %v1027 = vadd.f32 %v977, %v1026
    %1028 = vmatmul.f32.gmra.mxu0 %v989
    %v1029 = vpop.f32.mrf.mxu0
    %v1030 = vadd.f32 %v977, %v1029
    %1031 = vmatmul.f32.gmra.mxu0 %v992
    %v1032 = vpop.f32.mrf.mxu0
    %v1033 = vadd.f32 %v977, %v1032
    %1034 = vmatmul.f32.gmra.mxu0 %v995
    %v1035 = vpop.f32.mrf.mxu0
    %v1036 = vadd.f32 %v977, %v1035
    %1037 = vmatmul.f32.gmra.mxu0 %v998
    %v1038 = vpop.f32.mrf.mxu0
    %v1039 = vadd.f32 %v977, %v1038
    %1040 = vmatmul.f32.gmra.mxu0 %v1001
    %v1041 = vpop.f32.mrf.mxu0
    %v1042 = vadd.f32 %v977, %v1041
    %1043 = vdwg.mxu0
    %1044 = vst [vmem:[#allocation10] sm:$0xff] %v1021
    %1045 = vst [vmem:[#allocation10 + $0x8] sm:$0xff] %v1024
    %1046 = vst [vmem:[#allocation10 + $0x10] sm:$0xff] %v1027
    %1047 = vst [vmem:[#allocation10 + $0x18] sm:$0xff] %v1030
    %1048 = vst [vmem:[#allocation10 + $0x20] sm:$0xff] %v1033
    %1049 = vst [vmem:[#allocation10 + $0x28] sm:$0xff] %v1036
    %1050 = vst [vmem:[#allocation10 + $0x30] sm:$0xff] %v1039
    %1051 = vst [vmem:[#allocation10 + $0x38] sm:$0xff] %v1042
    // Predicated region
    $region42: #{tpu_custom_call.1} parent=1 // pred_check
      _
    $region43: #{tpu_custom_call.1} parent=1 // pred_check_branch
      %1053 = sbr.rel (0) target = $region45
    $region44: #{tpu_custom_call.1} parent=1 // pred_region
      %1055 = vsyncadd [#allocation4], 0
      %s1056 = sshll.u32 [#allocation10], 4
      %s1057 = int_to_ptr.vmem [resolvable:$true] %s1056
      %s1058 = sshll.u32 %s6, 4
      %s1059 = int_to_ptr.hbm [resolvable:$true] %s1058
      %1064 = dma.vmem_to_hbm [thread:$0]  %s1057, 1024, %s1059, [#allocation4], 128, 128, 8
    $region45: #{tpu_custom_call.1} parent=1 // pred_fallthru
      _
    // Predicated region
    $region46: #{tpu_custom_call.1} parent=1 // pred_check
      _
    $region47: #{tpu_custom_call.1} parent=1 // pred_check_branch
      %1066 = sbr.rel (0) target = $region49
    $region48: #{tpu_custom_call.1} parent=1 // pred_region
      %1068 = dma.done [#allocation4], 1024
    $region49: #{tpu_custom_call.1} parent=1 // pred_fallthru
      _
    %1069 = vsyncpa [#allocation3], 1
    %1070 = vsyncpa [#allocation6], 1
    %1071 = vsyncpa [#allocation9], 1
    %1072 = vsyncpa [#allocation4], 1

</llo_original>
